<compile_context>
chip_gen: v7x
topology: tpu7x:2x2x1
jax: 0.10.0
libtpu: 0.0.40
codegen_flags: <defaults>
</compile_context>

<pallas_src>
import jax
import jax.numpy as jnp
from jax.experimental import pallas as pl
from jax.experimental.pallas import tpu as pltpu


def _round_up(x, m):
    return (x + m - 1) // m * m


def _tpu_generation():
    """Best-effort TPU generation + physical VMEM capacity (conservative on unknown)."""
    try:
        kind = jax.devices()[0].device_kind.lower()
    except Exception:
        kind = ""
    if "v7" in kind:
        return "v7x", 64 << 20
    if "v6" in kind:
        return "v6e", 128 << 20
    if "v5 lite" in kind or "v5e" in kind or "v5litepod" in kind:
        return "v5e", 128 << 20
    if "v5" in kind:
        return "v5p", 128 << 20
    if "v4" in kind:
        return "v4", 128 << 20
    return "unknown", 64 << 20


def _auto_config(B, S, d, in_bytes, sims_bytes, gen, vmem_cap, tb, ts, resident):
    """Fill in tb / ts / resident-RHS / vmem_limit under a per-generation VMEM budget."""
    align_s = 256 if gen in ("v6e", "v7x") else 128      # full MXU tiles on v6e/v7x
    align_b = 16 if in_bytes == 2 else 8                 # bf16 packs (16,128) per vreg

    if tb is None:
        tb = min(256, _round_up(B, align_b))
        if gen == "v7x":
            # Ensure >= 2 B tiles so the "parallel" axis shards across both TensorCores.
            while tb > align_b and (B + tb - 1) // tb < 2:
                tb = max(align_b, tb // 2)
    tb = _round_up(tb, align_b)

    d_lane = _round_up(d, 128)                           # ve lane padding in VMEM
    d_sub = _round_up(d, 16 if in_bytes == 2 else 8)     # rhs sublane padding in VMEM

    def need_bytes(ts_, resident_):
        s_pad = _round_up(S, ts_)
        j_tiles = s_pad // ts_
        n = 2 * tb * d_lane * in_bytes                               # ve (double-buffered)
        n += 2 * (j_tiles if resident_ else 1) * d_sub * ts_ * in_bytes  # step_embed tiles
        n += 2 * tb * ts_ * sims_bytes                               # sims out
        n += 8 * tb * 128 * 4                                        # labels/lse/m/l ((tb,1) -> 128 lanes)
        return n + (2 << 20)                                         # compiler scratch slack

    budget = int(vmem_cap * 0.45)

    if ts is None or resident is None:
        cands = [c for c in (2048, 1024, 512, 256, 128) if (c % align_s == 0 or c == 128)]
        if ts is not None:
            cands = [_round_up(ts, 128)]
        chosen = None
        for want_res in ((True, False) if resident is None else (resident,)):
            for c in cands:
                ts_try = min(_round_up(c, 128), _round_up(S, 128))
                if need_bytes(ts_try, want_res) <= budget:
                    chosen = (ts_try, want_res)
                    break
            if chosen is not None:
                break
        if chosen is None:
            chosen = (min(128, _round_up(S, 128)), False)
        ts, resident = chosen
    else:
        ts = min(_round_up(ts, 128), _round_up(S, 128))

    need = need_bytes(ts, resident)
    vmem_limit = int(min(vmem_cap - (2 << 20), max(need + (8 << 20), 32 << 20)))
    return tb, ts, bool(resident), vmem_limit


def _make_kernel(tb, ts, S, S_pad, resident_rhs, exp_dtype):
    pad_s = S_pad != S
    num_j = S_pad // ts

    def kernel(lbl_ref, ve_ref, rhs_ref, sims_ref, lse_ref, m_sc, l_sc):
        # program_id only at kernel top level (never inside pl.when bodies).
        j = pl.program_id(1)

        @pl.when(j == 0)
        def _init():
            m_sc[...] = jnp.full_like(m_sc, -jnp.inf)
            l_sc[...] = jnp.zeros_like(l_sc)

        # RHS tile (d, ts): resident -> dynamic leading-axis index into the VMEM-resident
        # (J, d, ts) slab (fetched from HBM exactly once); streamed -> per-step (1, d, ts).
        rhs = rhs_ref[j] if resident_rhs else rhs_ref[0]

        # sims tile (tb, ts) = (tb, d) @ (d, ts); NN matmul, f32 MXU accumulation.
        sims = jax.lax.dot_general(
            ve_ref[...], rhs,
            dimension_numbers=(((1,), (0,)), ((), ())),
            preferred_element_type=jnp.float32)
        sims_ref[...] = sims.astype(sims_ref.dtype)      # bf16 by default (halved HBM write)

        labels = lbl_ref[...]                                           # (tb, 1) int32
        col_local = jax.lax.broadcasted_iota(jnp.int32, (tb, ts), 1)    # j-independent iota
        is_label = col_local == (labels - j * ts)

        # Denominator logits: label column zeroed (not -inf); padded S columns excluded.
        den = jnp.where(is_label, 0.0, sims)
        if pad_s:
            den = jnp.where(col_local < (S - j * ts), den, -jnp.inf)

        # Online logsumexp update. m_new is always finite (every tile has real columns),
        # so alpha = exp(-inf - finite) = 0 on the first tile, never NaN.
        m_tile = jnp.max(den, axis=1, keepdims=True)
        m_new = jnp.maximum(m_sc[...], m_tile)
        alpha = jnp.exp(m_sc[...] - m_new)
        p = jnp.exp((den - m_new).astype(exp_dtype))     # bf16 EUP on v6e/v7x, f32 elsewhere
        l_sc[...] = alpha * l_sc[...] + jnp.sum(p.astype(jnp.float32), axis=1, keepdims=True)
        m_sc[...] = m_new

        @pl.when(j == num_j - 1)
        def _fin():
            lse_ref[...] = m_sc[...] + jnp.log(l_sc[...])

    return kernel


def step_regression_nce_loss(video_embed, step_embed, video_labels, *,
                             tb=None, ts=None, resident_rhs=None,
                             sims_dtype=None, compute_in_bf16=True, exp_in_bf16=None):
    """video_embed: (B, d), step_embed: (S, d), video_labels: (B,) int. Returns (loss, sims)."""
    B, d = video_embed.shape
    S, d2 = step_embed.shape
    assert d == d2

    gen, vmem_cap = _tpu_generation()

    # Optionally downcast f32 operands to bf16 for the MXU / DMA (f32 accumulation kept).
    if compute_in_bf16 and video_embed.dtype == jnp.float32:
        ve_in = video_embed.astype(jnp.bfloat16)
        se_in = step_embed.astype(jnp.bfloat16)
    else:
        ve_in, se_in = video_embed, step_embed
    cdtype = ve_in.dtype
    in_bytes = jnp.dtype(cdtype).itemsize

    if sims_dtype is None:
        sims_dtype = cdtype                      # bf16 sims when compute is bf16
    sims_bytes = jnp.dtype(sims_dtype).itemsize

    if exp_in_bf16 is None:
        exp_in_bf16 = gen in ("v6e", "v7x")      # v5e EUP has no bf16 path
    exp_dtype = jnp.bfloat16 if exp_in_bf16 else jnp.float32

    tb, ts, resident_rhs, vmem_limit = _auto_config(
        B, S, d, in_bytes, sims_bytes, gen, vmem_cap, tb, ts, resident_rhs)

    B_pad = _round_up(B, tb)
    S_pad = _round_up(S, ts)
    J = S_pad // ts
    grid = (B_pad // tb, J)

    # One-time layout plumbing in the wrapper:
    #   - zero-pad B to a tb multiple, S to a ts multiple (masked / sliced off).
    #   - step_embed reorganized to (J, d, ts): each S tile is a contiguous NN-matmul RHS
    #     slab with S on lanes -> lane-dense (tb, ts) sims stores.
    ve = ve_in if B_pad == B else jnp.pad(ve_in, ((0, B_pad - B), (0, 0)))
    se_p = se_in if S_pad == S else jnp.pad(se_in, ((0, S_pad - S), (0, 0)))
    rhs3 = se_p.reshape(J, ts, d).transpose(0, 2, 1)          # (J, d, ts)

    labels = video_labels.astype(jnp.int32).reshape(B, 1)
    if B_pad != B:
        labels = jnp.pad(labels, ((0, B_pad - B), (0, 0)))

    kernel = _make_kernel(tb, ts, S, S_pad, resident_rhs, exp_dtype)

    if resident_rhs:
        rhs_spec = pl.BlockSpec((J, d, ts), lambda i, j: (0, 0, 0))   # fetched once, stays in VMEM
    else:
        rhs_spec = pl.BlockSpec((1, d, ts), lambda i, j: (j, 0, 0))   # streamed per S tile

    cost = pl.CostEstimate(
        flops=2 * B_pad * S_pad * d,
        transcendentals=B_pad * S_pad,
        bytes_accessed=(B_pad * d * in_bytes
                        + d * S_pad * in_bytes * (1 if resident_rhs else grid[0])
                        + B_pad * S_pad * sims_bytes
                        + 2 * B_pad * 4))

    grid_spec = pltpu.PrefetchScalarGridSpec(
        num_scalar_prefetch=0,
        grid=grid,
        in_specs=[
            pl.BlockSpec((tb, 1), lambda i, j: (i, 0)),    # labels
            pl.BlockSpec((tb, d), lambda i, j: (i, 0)),    # video_embed (reused across j)
            rhs_spec,                                      # step_embed tiles
        ],
        out_specs=(
            pl.BlockSpec((tb, ts), lambda i, j: (i, j)),   # sims (lane-dense)
            pl.BlockSpec((tb, 1), lambda i, j: (i, 0)),    # per-row logsumexp
        ),
        scratch_shapes=[
            pltpu.VMEM((tb, 1), jnp.float32),   # running max
            pltpu.VMEM((tb, 1), jnp.float32),   # running sum-exp
        ],
    )

    sims_pad, lse_pad = pl.pallas_call(
        kernel,
        out_shape=(jax.ShapeDtypeStruct((B_pad, S_pad), sims_dtype),
                   jax.ShapeDtypeStruct((B_pad, 1), jnp.float32)),
        grid_spec=grid_spec,
        compiler_params=pltpu.CompilerParams(
            dimension_semantics=("parallel", "arbitrary"),
            vmem_limit_bytes=vmem_limit),
        cost_estimate=cost,
    )(labels, ve, rhs3)

    sims = sims_pad[:B, :S]
    lse = lse_pad[:B, 0]

    # nominator[i] = sims[i, labels[i]], recomputed outside the kernel as a tiny (B, d)
    # f32 dot so its precision is independent of sims_dtype (removes the in-kernel
    # cross-lane reduce flagged by the perf review).
    gathered = jnp.take(step_embed, video_labels.astype(jnp.int32), axis=0)
    nominator = jnp.sum(video_embed.astype(jnp.float32) * gathered.astype(jnp.float32),
                        axis=1)
    loss = jnp.mean(lse - nominator)
    return loss, sims


def _reference(video_embed, step_embed, video_labels):
    ve = video_embed.astype(jnp.float32)
    se = step_embed.astype(jnp.float32)
    B, S = ve.shape[0], se.shape[0]
    sims = ve @ se.T
    nominator = sims[jnp.arange(B), video_labels]
    mask = jnp.ones((B, S), jnp.float32).at[jnp.arange(B), video_labels].set(0.0)
    den = jax.scipy.special.logsumexp(sims * mask, axis=1)
    return jnp.mean(den - nominator), sims


if __name__ == "__main__":
    # Small shapes that still exercise B padding, S padding, multi-tile online LSE,
    # the resident-RHS path, and the streamed-RHS path.
    B, d, S = 20, 64, 300
    key = jax.random.PRNGKey(0)
    k1, k2, k3 = jax.random.split(key, 3)

    video_embed = jax.random.normal(k1, (B, d), dtype=jnp.float32).astype(jnp.bfloat16)
    step_embed = jax.random.normal(k2, (S, d), dtype=jnp.float32).astype(jnp.bfloat16)
    video_labels = jax.random.randint(k3, (B,), 0, S, dtype=jnp.int32)

    ref_loss, ref_sims = _reference(video_embed, step_embed, video_labels)

    configs = [
        dict(),                                       # auto tiles, auto residency
        dict(tb=16, ts=128, resident_rhs=True),       # grid (2,3), resident RHS, online LSE
        dict(tb=16, ts=128, resident_rhs=False),      # grid (2,3), streamed RHS
    ]
    for cfg in configs:
        loss, sims = step_regression_nce_loss(video_embed, step_embed, video_labels, **cfg)
        loss = jax.block_until_ready(loss)
        sims = jax.block_until_ready(sims)

        assert sims.shape == (B, S), (cfg, sims.shape)
        sims_f32 = sims.astype(jnp.float32)
        assert jnp.allclose(sims_f32, ref_sims, atol=5e-2, rtol=2e-2), \
            (cfg, float(jnp.max(jnp.abs(sims_f32 - ref_sims))))
        assert jnp.allclose(loss, ref_loss, atol=5e-2, rtol=2e-2), \
            (cfg, float(loss), float(ref_loss))

    print("KERNEL_OK")
</pallas_src>

<mosaic_0001>
module attributes {stable_mosaic.version = 11 : i64} {
  func.func @kernel(%arg0: i32, %arg1: i32, %arg2: memref<32x1xi32, #tpu.memory_space<vmem>>, %arg3: memref<32x64xbf16, #tpu.memory_space<vmem>>, %arg4: memref<1x64x384xbf16, #tpu.memory_space<vmem>>, %arg5: memref<32x384xbf16, #tpu.memory_space<vmem>>, %arg6: memref<32x1xf32, #tpu.memory_space<vmem>>, %arg7: memref<32x1xf32, #tpu.memory_space<vmem>>, %arg8: memref<32x1xf32, #tpu.memory_space<vmem>>) attributes {dimension_semantics = [#tpu.dimension_semantics<parallel>, #tpu.dimension_semantics<arbitrary>], iteration_bounds = array<i64: 1, 1>, scalar_prefetch = 0 : i64, scratch_operands = 2 : i64, tpu.core_type = #tpu.core_type<tc>, window_params = [{transform_indices = @transform_0, window_bounds = array<i64: 32, 1>}, {transform_indices = @transform_1, window_bounds = array<i64: 32, 64>}, {pipeline_mode = #tpu.pipeline_mode<synchronous>, transform_indices = @transform_2, window_bounds = array<i64: 1, 64, 384>}, {transform_indices = @transform_3, window_bounds = array<i64: 32, 384>}, {transform_indices = @transform_4, window_bounds = array<i64: 32, 1>}]} {
    %c0_i32 = arith.constant 0 : i32
    %0 = arith.cmpi eq, %arg1, %c0_i32 : i32
    %1 = arith.extui %0 : i1 to i32
    %c0_i32_0 = arith.constant 0 : i32
    %2 = arith.cmpi ne, %1, %c0_i32_0 : i32
    scf.if %2 {
      %cst_25 = arith.constant 0xFF800000 : f32
      %45 = vector.broadcast %cst_25 : f32 to vector<32x1xf32>
      %c0_26 = arith.constant 0 : index
      %c0_27 = arith.constant 0 : index
      %46 = vector.load %arg7[%c0_26, %c0_27] : memref<32x1xf32, #tpu.memory_space<vmem>>, vector<32x1xf32>
      tpu.vector_store %arg7[%c0_26, %c0_27], %45 {strides = array<i32>} : memref<32x1xf32, #tpu.memory_space<vmem>>, vector<32x1xf32>,
      %cst_28 = arith.constant 0.000000e+00 : f32
      %47 = vector.broadcast %cst_28 : f32 to vector<32x1xf32>
      %c0_29 = arith.constant 0 : index
      %c0_30 = arith.constant 0 : index
      %48 = vector.load %arg8[%c0_29, %c0_30] : memref<32x1xf32, #tpu.memory_space<vmem>>, vector<32x1xf32>
      tpu.vector_store %arg8[%c0_29, %c0_30], %47 {strides = array<i32>} : memref<32x1xf32, #tpu.memory_space<vmem>>, vector<32x1xf32>,
    } else {
    }
    %3 = arith.index_cast %arg1 : i32 to index
    %c0 = arith.constant 0 : index
    %c0_1 = arith.constant 0 : index
    %4 = vector.load %arg4[%3, %c0, %c0_1] : memref<1x64x384xbf16, #tpu.memory_space<vmem>>, vector<1x64x384xbf16>
    %5 = vector.shape_cast %4 : vector<1x64x384xbf16> to vector<64x384xbf16>
    %c0_2 = arith.constant 0 : index
    %c0_3 = arith.constant 0 : index
    %6 = vector.load %arg3[%c0_2, %c0_3] : memref<32x64xbf16, #tpu.memory_space<vmem>>, vector<32x64xbf16>
    %cst = arith.constant dense<0.000000e+00> : vector<32x384xf32>
    %7 = tpu.matmul %6, %5, %cst {dimension_numbers = #tpu.dot_dimension_numbers<[1], [0], [0], [1], [0, 0, 1, 1], [], []>} : vector<32x64xbf16>, vector<64x384xbf16>, vector<32x384xf32> -> vector<32x384xf32>
    %8 = arith.truncf %7 : vector<32x384xf32> to vector<32x384xbf16>
    %c0_4 = arith.constant 0 : index
    %c0_5 = arith.constant 0 : index
    %9 = vector.load %arg5[%c0_4, %c0_5] : memref<32x384xbf16, #tpu.memory_space<vmem>>, vector<32x384xbf16>
    tpu.vector_store %arg5[%c0_4, %c0_5], %8 {strides = array<i32>} : memref<32x384xbf16, #tpu.memory_space<vmem>>, vector<32x384xbf16>,
    %c0_6 = arith.constant 0 : index
    %c0_7 = arith.constant 0 : index
    %10 = vector.load %arg2[%c0_6, %c0_7] : memref<32x1xi32, #tpu.memory_space<vmem>>, vector<32x1xi32>
    %11 = tpu.iota {dimensions = array<i32: 1>} : vector<32x384xi32>
    %c384_i32 = arith.constant 384 : i32
    %12 = arith.muli %arg1, %c384_i32 : i32
    %13 = vector.broadcast %12 : i32 to vector<32x1xi32>
    %14 = arith.subi %10, %13 : vector<32x1xi32>
    %15 = vector.broadcast %14 : vector<32x1xi32> to vector<32x384xi32>
    %16 = arith.cmpi eq, %11, %15 : vector<32x384xi32>
    %cst_8 = arith.constant 0.000000e+00 : f32
    %17 = vector.broadcast %cst_8 : f32 to vector<32x384xf32>
    %18 = arith.select %16, %17, %7 : vector<32x384xi1>, vector<32x384xf32>
    %c384_i32_9 = arith.constant 384 : i32
    %19 = arith.muli %arg1, %c384_i32_9 : i32
    %c300_i32 = arith.constant 300 : i32
    %20 = arith.subi %c300_i32, %19 : i32
    %21 = vector.broadcast %20 : i32 to vector<32x384xi32>
    %22 = arith.cmpi slt, %11, %21 : vector<32x384xi32>
    %cst_10 = arith.constant 0xFF800000 : f32
    %23 = vector.broadcast %cst_10 : f32 to vector<32x384xf32>
    %24 = arith.select %22, %18, %23 : vector<32x384xi1>, vector<32x384xf32>
    %cst_11 = arith.constant dense<0xFF800000> : vector<32xf32>
    %25 = vector.multi_reduction <maximumf>, %24, %cst_11 [1] : vector<32x384xf32> to vector<32xf32>
    %26 = vector.shape_cast %25 : vector<32xf32> to vector<32x1xf32>
    %c0_12 = arith.constant 0 : index
    %c0_13 = arith.constant 0 : index
    %27 = vector.load %arg7[%c0_12, %c0_13] : memref<32x1xf32, #tpu.memory_space<vmem>>, vector<32x1xf32>
    %28 = arith.maximumf %27, %26 : vector<32x1xf32>
    %c0_14 = arith.constant 0 : index
    %c0_15 = arith.constant 0 : index
    %29 = vector.load %arg7[%c0_14, %c0_15] : memref<32x1xf32, #tpu.memory_space<vmem>>, vector<32x1xf32>
    %30 = arith.subf %29, %28 : vector<32x1xf32>
    %31 = math.exp %30 : vector<32x1xf32>
    %32 = vector.broadcast %28 : vector<32x1xf32> to vector<32x384xf32>
    %33 = arith.subf %24, %32 : vector<32x384xf32>
    %34 = math.exp %33 : vector<32x384xf32>
    %c0_16 = arith.constant 0 : index
    %c0_17 = arith.constant 0 : index
    %35 = vector.load %arg8[%c0_16, %c0_17] : memref<32x1xf32, #tpu.memory_space<vmem>>, vector<32x1xf32>
    %36 = arith.mulf %31, %35 : vector<32x1xf32>
    %cst_18 = arith.constant dense<0.000000e+00> : vector<32xf32>
    %37 = vector.multi_reduction <add>, %34, %cst_18 [1] : vector<32x384xf32> to vector<32xf32>
    %38 = vector.shape_cast %37 : vector<32xf32> to vector<32x1xf32>
    %39 = arith.addf %36, %38 : vector<32x1xf32>
    %c0_19 = arith.constant 0 : index
    %c0_20 = arith.constant 0 : index
    %40 = vector.load %arg8[%c0_19, %c0_20] : memref<32x1xf32, #tpu.memory_space<vmem>>, vector<32x1xf32>
    tpu.vector_store %arg8[%c0_19, %c0_20], %39 {strides = array<i32>} : memref<32x1xf32, #tpu.memory_space<vmem>>, vector<32x1xf32>,
    %c0_21 = arith.constant 0 : index
    %c0_22 = arith.constant 0 : index
    %41 = vector.load %arg7[%c0_21, %c0_22] : memref<32x1xf32, #tpu.memory_space<vmem>>, vector<32x1xf32>
    tpu.vector_store %arg7[%c0_21, %c0_22], %28 {strides = array<i32>} : memref<32x1xf32, #tpu.memory_space<vmem>>, vector<32x1xf32>,
    %c0_i32_23 = arith.constant 0 : i32
    %42 = arith.cmpi eq, %arg1, %c0_i32_23 : i32
    %43 = arith.extui %42 : i1 to i32
    %c0_i32_24 = arith.constant 0 : i32
    %44 = arith.cmpi ne, %43, %c0_i32_24 : i32
    scf.if %44 {
      %c0_25 = arith.constant 0 : index
      %c0_26 = arith.constant 0 : index
      %45 = vector.load %arg7[%c0_25, %c0_26] : memref<32x1xf32, #tpu.memory_space<vmem>>, vector<32x1xf32>
      %c0_27 = arith.constant 0 : index
      %c0_28 = arith.constant 0 : index
      %46 = vector.load %arg8[%c0_27, %c0_28] : memref<32x1xf32, #tpu.memory_space<vmem>>, vector<32x1xf32>
      %47 = math.log %46 : vector<32x1xf32>
      %48 = arith.addf %45, %47 : vector<32x1xf32>
      %c0_29 = arith.constant 0 : index
      %c0_30 = arith.constant 0 : index
      %49 = vector.load %arg6[%c0_29, %c0_30] : memref<32x1xf32, #tpu.memory_space<vmem>>, vector<32x1xf32>
      tpu.vector_store %arg6[%c0_29, %c0_30], %48 {strides = array<i32>} : memref<32x1xf32, #tpu.memory_space<vmem>>, vector<32x1xf32>,
    } else {
    }
    return
  }
  func.func @transform_0(%arg0: i32, %arg1: i32) -> (i32, i32) {
    %c0_i32 = arith.constant 0 : i32
    %c0_i32_0 = arith.constant 0 : i32
    return %arg0, %c0_i32 : i32, i32
  }
  func.func @transform_1(%arg0: i32, %arg1: i32) -> (i32, i32) {
    %c0_i32 = arith.constant 0 : i32
    %c0_i32_0 = arith.constant 0 : i32
    return %arg0, %c0_i32 : i32, i32
  }
  func.func @transform_2(%arg0: i32, %arg1: i32) -> (i32, i32, i32) {
    %c0_i32 = arith.constant 0 : i32
    %c0_i32_0 = arith.constant 0 : i32
    %c0_i32_1 = arith.constant 0 : i32
    %c0_i32_2 = arith.constant 0 : i32
    return %c0_i32, %c0_i32_0, %c0_i32_1 : i32, i32, i32
  }
  func.func @transform_3(%arg0: i32, %arg1: i32) -> (i32, i32) {
    %c0_i32 = arith.constant 0 : i32
    return %arg0, %arg1 : i32, i32
  }
  func.func @transform_4(%arg0: i32, %arg1: i32) -> (i32, i32) {
    %c0_i32 = arith.constant 0 : i32
    %c0_i32_0 = arith.constant 0 : i32
    return %arg0, %c0_i32 : i32, i32
  }
}

</mosaic_0001>

<llo_original>
// kernel: tpu_custom_call.1
$region0: #{tpu_custom_call.1}
  #allocation0 [shape = 'u32[]', space=smem, size = 0x4, offset = 0x4, fixed_abs, tag = 'smem constant byte address 0x4 - core index']
  #allocation1 [shape = 'u32[144,128]{1,0:T(1,128)}', space=vmem, size = 0x12000, scoped, tag = 'internal scratch']
  #allocation2 [shape = 'f32[32,1]{1,0:T(8,128)}', space=vmem, size = 0x4000, scoped, tag = 'scratch operand']
  #allocation3 [shape = 'f32[32,1]{1,0:T(8,128)}', space=vmem, size = 0x4000, scoped, tag = 'scratch operand']
  %s0 = inlined_call_operand.vmem [shape: s32[32,1], index: 0, kind: input, shape index: {}]
  %s1 = inlined_call_operand.vmem [shape: bf16[32,64], index: 1, kind: input, shape index: {}]
  %s2 = inlined_call_operand.hbm [shape: bf16[1,64,384], index: 2, kind: input, shape index: {}]
  %s3 = inlined_call_operand.hbm [shape: bf16[32,384], index: 3, kind: output, shape index: {0}]
  %s4 = inlined_call_operand.vmem [shape: f32[32,1], index: 4, kind: output, shape index: {1}]
  %5 = xla_tuple %s3, %s4
  %s6 = sld [smem:[#allocation0]]
  $region42: #{tpu_custom_call.1} parent=0
    _
  %s8 = ssub.s32 1, %s6
  %s9 = scalar_select 0, %s8, %s6
  $region1: #{tpu_custom_call.1} parent=0
    #allocation4 [shape = 'u8[49152]{0}', space=vmem, size = 0xc000, scoped, tag = 'input window, operand 2, single buffered']
    #allocation5 [shape = 's32[1]{0}', space=sflag, size = 0x4, scoped, tag = 'scoped memory for tpu_custom_call.1']
    #allocation6 [shape = 's32[1]{0}', space=sflag, size = 0x4, scoped, tag = 'scoped memory for tpu_custom_call.1']
    #allocation7 [shape = 'u8[24576]{0}', space=vmem, size = 0x6000, scoped, tag = 'output window, operand 0, single buffered']
    %10 = vsyncpa [#allocation5], 0
    %11 = vsyncpa [#allocation6], 0
    // Predicated region
    $region2: #{tpu_custom_call.1} parent=1 // pred_check
      _
    $region3: #{tpu_custom_call.1} parent=1 // pred_check_branch
      %13 = sbr.rel (0) target = $region5
    $region4: #{tpu_custom_call.1} parent=1 // pred_region
      _
    $region5: #{tpu_custom_call.1} parent=1 // pred_fallthru
      _
    // Predicated region
    $region6: #{tpu_custom_call.1} parent=1 // pred_check
      _
    $region7: #{tpu_custom_call.1} parent=1 // pred_check_branch
      %15 = sbr.rel (0) target = $region9
    $region8: #{tpu_custom_call.1} parent=1 // pred_region
      _
    $region9: #{tpu_custom_call.1} parent=1 // pred_fallthru
      _
    // Predicated region
    $region10: #{tpu_custom_call.1} parent=1 // pred_check
      _
    $region11: #{tpu_custom_call.1} parent=1 // pred_check_branch
      %17 = sbr.rel (0) target = $region13
    $region12: #{tpu_custom_call.1} parent=1 // pred_region
      %s19 = ssub.s32 1536, 1536
      %20 = vsyncadd [#allocation5], %s19
      %s21 = sshll.u32 [#allocation4], 4
      %s22 = int_to_ptr.vmem [resolvable:$true] %s21
      %27 = dma.hbm_to_vmem [thread:$0]  %s2, 1536, %s22, [#allocation5], 192, 192, 12
    $region13: #{tpu_custom_call.1} parent=1 // pred_fallthru
      _
    // Predicated region
    $region14: #{tpu_custom_call.1} parent=1 // pred_check
      _
    $region15: #{tpu_custom_call.1} parent=1 // pred_check_branch
      %29 = sbr.rel (0) target = $region17
    $region16: #{tpu_custom_call.1} parent=1 // pred_region
      %30 = dma.done [#allocation5], 1536
    $region17: #{tpu_custom_call.1} parent=1 // pred_fallthru
      _
    %p32 = scmp.eq.s32.totalorder 0, 0
    // Predicated region
    $region18: #{tpu_custom_call.1} parent=1 // pred_check
      %p33 = pneg %p32
    $region19: #{tpu_custom_call.1} parent=1 // pred_check_branch
      %35 = sbr.rel (%p33) target = $region21
    $region20: #{tpu_custom_call.1} parent=1 // pred_region
      %vm36 = vcmask 7168
      %37 = vst.msk [vmem:[#allocation2] sm:$0xff] %vm36, -inf
      %38 = vst.msk [vmem:[#allocation2 + $0x8] sm:$0xff] %vm36, -inf
      %39 = vst.msk [vmem:[#allocation2 + $0x10] sm:$0xff] %vm36, -inf
      %40 = vst.msk [vmem:[#allocation2 + $0x18] sm:$0xff] %vm36, -inf
      %41 = vst.msk [vmem:[#allocation3] sm:$0xff] %vm36, 0.0
      %42 = vst.msk [vmem:[#allocation3 + $0x8] sm:$0xff] %vm36, 0.0
      %43 = vst.msk [vmem:[#allocation3 + $0x10] sm:$0xff] %vm36, 0.0
      %44 = vst.msk [vmem:[#allocation3 + $0x18] sm:$0xff] %vm36, 0.0
    $region21: #{tpu_custom_call.1} parent=1 // pred_fallthru
      _
    %s45 = smul.u32 0, 24
    %s46 = smul.addr %s45, 4
    %s47 = scalar_lea.vmem [#allocation4], %s46
    %v48 = vld [vmem:[%s47] sm:$0xff]
    %v49 = vld [vmem:[%s47 + $0x8] sm:$0xf]
    %v50 = vld [vmem:[%s47 + $0xc] sm:$0xff]
    %v51 = vld [vmem:[%s47 + $0x14] sm:$0xf]
    %v52 = vld [vmem:[%s47 + $0x18] sm:$0xff]
    %v53 = vld [vmem:[%s47 + $0x20] sm:$0xf]
    %v54 = vld [vmem:[%s47 + $0x24] sm:$0xff]
    %v55 = vld [vmem:[%s47 + $0x2c] sm:$0xf]
    %v56 = vld [vmem:[%s47 + $0x30] sm:$0xff]
    %v57 = vld [vmem:[%s47 + $0x38] sm:$0xf]
    %v58 = vld [vmem:[%s47 + $0x3c] sm:$0xff]
    %v59 = vld [vmem:[%s47 + $0x44] sm:$0xf]
    %v60 = vld [vmem:[%s47 + $0x48] sm:$0xff]
    %v61 = vld [vmem:[%s47 + $0x50] sm:$0xf]
    %v62 = vld [vmem:[%s47 + $0x54] sm:$0xff]
    %v63 = vld [vmem:[%s47 + $0x5c] sm:$0xf]
    %v64 = vld [vmem:[%s1] sm:$0xf]
    %v65 = vld [vmem:[%s1 + $0x4] sm:$0xf]
    %v66 = vld [vmem:[%s1 + $0x8] sm:$0xf]
    %v67 = vld [vmem:[%s1 + $0xc] sm:$0xf]
    %v72 = vunpack.c.l.b16 %v64
    %v73 = vunpack.c.l.b16 %v65
    %v74 = vunpack.c.l.b16 %v66
    %v75 = vunpack.c.l.b16 %v67
    %v76 = vpack.c.b16 %v73, %v72
    %v77 = vpack.c.b16 %v75, %v74
    %v94 = vunpack.c.l.b16 %v48
    %v95 = vunpack.c.h.b16 %v48
    %v96 = vunpack.c.l.b16 %v49
    %v97 = vunpack.c.l.b16 %v50
    %v98 = vunpack.c.h.b16 %v50
    %v99 = vunpack.c.l.b16 %v51
    %v100 = vunpack.c.l.b16 %v52
    %v101 = vunpack.c.h.b16 %v52
    %v102 = vunpack.c.l.b16 %v53
    %v103 = vunpack.c.l.b16 %v54
    %v104 = vunpack.c.h.b16 %v54
    %v105 = vunpack.c.l.b16 %v55
    %v106 = vunpack.c.l.b16 %v56
    %v107 = vunpack.c.h.b16 %v56
    %v108 = vunpack.c.l.b16 %v57
    %v109 = vunpack.c.l.b16 %v58
    %v110 = vunpack.c.h.b16 %v58
    %v111 = vunpack.c.l.b16 %v59
    %v112 = vunpack.c.l.b16 %v60
    %v113 = vunpack.c.h.b16 %v60
    %v114 = vunpack.c.l.b16 %v61
    %v115 = vunpack.c.l.b16 %v62
    %v116 = vunpack.c.h.b16 %v62
    %v117 = vunpack.c.l.b16 %v63
    %v118 = vpack.c.b16 %v97, %v94
    %v119 = vpack.c.b16 %v98, %v95
    %v120 = vpack.c.b16 %v99, %v96
    %v121 = vpack.c.b16 %v103, %v100
    %v122 = vpack.c.b16 %v104, %v101
    %v123 = vpack.c.b16 %v105, %v102
    %v124 = vpack.c.b16 %v109, %v106
    %v125 = vpack.c.b16 %v110, %v107
    %v126 = vpack.c.b16 %v111, %v108
    %v127 = vpack.c.b16 %v115, %v112
    %v128 = vpack.c.b16 %v116, %v113
    %v129 = vpack.c.b16 %v117, %v114
    %vm142 = vcmask 523264
    %v144 = vsel %vm142, %v76, 0
    %v147 = vsel %vm142, %v77, 0
    %149 = vmatprep.subr.bf16.mxu0 %v119
    %150 = vmatpush1.bf16.msra.mxu0 %v118
    %151 = vmatprep.subr.bf16.mxu0 %v122
    %152 = vmatpush1.bf16.msra.mxu0 %v121
    %153 = vmatprep.subr.bf16.mxu0 %v125
    %154 = vmatpush1.bf16.msra.mxu0 %v124
    %155 = vmatprep.subr.bf16.mxu0 %v128
    %156 = vmatpush1.bf16.msra.mxu0 %v127
    %157 = vmatprep.subr.bf16.mxu0 0
    %158 = vmatpush1.bf16.msra.mxu0 0
    %159 = vmatprep.subr.bf16.mxu0 0
    %160 = vmatpush1.bf16.msra.mxu0 0
    %161 = vmatprep.subr.bf16.mxu0 0
    %162 = vmatpush1.bf16.msra.mxu0 0
    %163 = vmatprep.subr.bf16.mxu0 0
    %164 = vmatpush1.bf16.msra.mxu0 0
    %165 = vmatprep.subr.bf16.mxu0 0
    %166 = vmatpush1.bf16.msra.mxu0 0
    %167 = vmatprep.subr.bf16.mxu0 0
    %168 = vmatpush1.bf16.msra.mxu0 0
    %169 = vmatprep.subr.bf16.mxu0 0
    %170 = vmatpush1.bf16.msra.mxu0 0
    %171 = vmatprep.subr.bf16.mxu0 0
    %172 = vmatpush1.bf16.msra.mxu0 0
    %173 = vmatprep.subr.bf16.mxu0 0
    %174 = vmatpush1.bf16.msra.mxu0 0
    %175 = vmatprep.subr.bf16.mxu0 0
    %176 = vmatpush1.bf16.msra.mxu0 0
    %177 = vmatprep.subr.bf16.mxu0 0
    %178 = vmatpush1.bf16.msra.mxu0 0
    %179 = vmatprep.subr.bf16.mxu0 0
    %180 = vmatpush1.bf16.msra.mxu0 0
    %181 = vmatprep.mubr.bf16.mxu0 0
    %182 = vmatmul.mubr.bf16.gmra.mrb[0].mxu0 %v144
    %v183 = vpop.f32.mrb[0].mxu0
    %v184 = vadd.f32 0.0, %v183
    %v185 = vpop.f32.mrb[0].mxu0
    %v186 = vadd.f32 0.0, %v185
    %v187 = vpop.f32.mrb[0].mxu0
    %v188 = vadd.f32 0.0, %v187
    %v189 = vpop.f32.mrb[0].mxu0
    %v190 = vadd.f32 0.0, %v189
    %191 = vmatprep.mubr.bf16.mxu0 0
    %192 = vmatmul.mubr.bf16.gmra.mrb[0].mxu0 %v147
    %v193 = vpop.f32.mrb[0].mxu0
    %v194 = vadd.f32 0.0, %v193
    %v195 = vpop.f32.mrb[0].mxu0
    %v196 = vadd.f32 0.0, %v195
    %v197 = vpop.f32.mrb[0].mxu0
    %v198 = vadd.f32 0.0, %v197
    %v199 = vpop.f32.mrb[0].mxu0
    %v200 = vadd.f32 0.0, %v199
    %201 = vdwg.mxu0
    %202 = vmatprep.subr.bf16.mxu0 0
    %203 = vmatpush1.bf16.msra.mxu0 %v120
    %204 = vmatprep.subr.bf16.mxu0 0
    %205 = vmatpush1.bf16.msra.mxu0 %v123
    %206 = vmatprep.subr.bf16.mxu0 0
    %207 = vmatpush1.bf16.msra.mxu0 %v126
    %208 = vmatprep.subr.bf16.mxu0 0
    %209 = vmatpush1.bf16.msra.mxu0 %v129
    %210 = vmatprep.subr.bf16.mxu0 0
    %211 = vmatpush1.bf16.msra.mxu0 0
    %212 = vmatprep.subr.bf16.mxu0 0
    %213 = vmatpush1.bf16.msra.mxu0 0
    %214 = vmatprep.subr.bf16.mxu0 0
    %215 = vmatpush1.bf16.msra.mxu0 0
    %216 = vmatprep.subr.bf16.mxu0 0
    %217 = vmatpush1.bf16.msra.mxu0 0
    %218 = vmatprep.subr.bf16.mxu0 0
    %219 = vmatpush1.bf16.msra.mxu0 0
    %220 = vmatprep.subr.bf16.mxu0 0
    %221 = vmatpush1.bf16.msra.mxu0 0
    %222 = vmatprep.subr.bf16.mxu0 0
    %223 = vmatpush1.bf16.msra.mxu0 0
    %224 = vmatprep.subr.bf16.mxu0 0
    %225 = vmatpush1.bf16.msra.mxu0 0
    %226 = vmatprep.subr.bf16.mxu0 0
    %227 = vmatpush1.bf16.msra.mxu0 0
    %228 = vmatprep.subr.bf16.mxu0 0
    %229 = vmatpush1.bf16.msra.mxu0 0
    %230 = vmatprep.subr.bf16.mxu0 0
    %231 = vmatpush1.bf16.msra.mxu0 0
    %232 = vmatprep.subr.bf16.mxu0 0
    %233 = vmatpush1.bf16.msra.mxu0 0
    %234 = vmatprep.mubr.bf16.mxu0 0
    %235 = vmatmul.mubr.bf16.gmra.mrb[0].mxu0 %v144
    %v236 = vpop.f32.mrb[0].mxu0
    %v237 = vadd.f32 0.0, %v236
    %v238 = vpop.f32.mrb[0].mxu0
    %v239 = vpop.f32.mrb[0].mxu0
    %v240 = vadd.f32 0.0, %v239
    %v241 = vpop.f32.mrb[0].mxu0
    %242 = vmatprep.mubr.bf16.mxu0 0
    %243 = vmatmul.mubr.bf16.gmra.mrb[0].mxu0 %v147
    %v244 = vpop.f32.mrb[0].mxu0
    %v245 = vadd.f32 0.0, %v244
    %v246 = vpop.f32.mrb[0].mxu0
    %v247 = vpop.f32.mrb[0].mxu0
    %v248 = vadd.f32 0.0, %v247
    %v249 = vpop.f32.mrb[0].mxu0
    %250 = vdwg.mxu0
    %v251 = vpack.c.bf16 %v188, %v184
    %v252 = vpack.c.bf16 %v190, %v186
    %v253 = vpack.c.bf16 %v240, %v237
    %v254 = vpack.c.bf16 %v198, %v194
    %v255 = vpack.c.bf16 %v200, %v196
    %v256 = vpack.c.bf16 %v248, %v245
    %v263 = vunpack.c.l.b16 %v251
    %v264 = vunpack.c.l.b16 %v252
    %v265 = vunpack.c.l.b16 %v253
    %v266 = vunpack.c.h.b16 %v251
    %v267 = vunpack.c.h.b16 %v252
    %v268 = vunpack.c.h.b16 %v253
    %v269 = vunpack.c.l.b16 %v254
    %v270 = vunpack.c.l.b16 %v255
    %v271 = vunpack.c.l.b16 %v256
    %v272 = vunpack.c.h.b16 %v254
    %v273 = vunpack.c.h.b16 %v255
    %v274 = vunpack.c.h.b16 %v256
    %v275 = vpack.c.b16 %v264, %v263
    %v276 = vpack.c.b16 %v265, %v265
    %v277 = vpack.c.b16 %v267, %v266
    %v278 = vpack.c.b16 %v268, %v268
    %v279 = vpack.c.b16 %v270, %v269
    %v280 = vpack.c.b16 %v271, %v271
    %v281 = vpack.c.b16 %v273, %v272
    %v282 = vpack.c.b16 %v274, %v274
    %291 = vst [vmem:[#allocation7] sm:$0xff] %v275
    %292 = vst [vmem:[#allocation7 + $0x8] sm:$0xf] %v276
    %293 = vst [vmem:[#allocation7 + $0xc] sm:$0xff] %v277
    %294 = vst [vmem:[#allocation7 + $0x14] sm:$0xf] %v278
    %295 = vst [vmem:[#allocation7 + $0x18] sm:$0xff] %v279
    %296 = vst [vmem:[#allocation7 + $0x20] sm:$0xf] %v280
    %297 = vst [vmem:[#allocation7 + $0x24] sm:$0xff] %v281
    %298 = vst [vmem:[#allocation7 + $0x2c] sm:$0xf] %v282
    %v299 = vld [vmem:[%s0] sm:$0xff]
    %v300 = vld [vmem:[%s0 + $0x8] sm:$0xff]
    %v301 = vld [vmem:[%s0 + $0x10] sm:$0xff]
    %v302 = vld [vmem:[%s0 + $0x18] sm:$0xff]
    %v303 = vlaneseq
    %v304 = vand.u32 %v303, 127
    %v305 = vadd.s32 %v304, 128
    %v306 = vadd.s32 %v304, 256
    %s307 = smul.u32 0, 384
    %v308 = vstv %s307
    %v309 = vsub.s32 %v299, %v308
    %v310 = vsub.s32 %v300, %v308
    %v311 = vsub.s32 %v301, %v308
    %v312 = vsub.s32 %v302, %v308
    %313 = vset.pattern.permute.xlu0 0
    %314 = vperm.xlu0 %313, %v309
    %v315 = vpop.permute.xlu0 %314
    %316 = vset.pattern.permute.xlu0 0
    %317 = vperm.xlu0 %316, %v310
    %v318 = vpop.permute.xlu0 %317
    %319 = vset.pattern.permute.xlu0 0
    %320 = vperm.xlu0 %319, %v311
    %v321 = vpop.permute.xlu0 %320
    %322 = vset.pattern.permute.xlu0 0
    %323 = vperm.xlu0 %322, %v312
    %v324 = vpop.permute.xlu0 %323
    %vm325 = vcmp.eq.s32.totalorder %v304, %v315
    %vm326 = vcmp.eq.s32.totalorder %v305, %v315
    %vm327 = vcmp.eq.s32.totalorder %v306, %v315
    %vm328 = vcmp.eq.s32.totalorder %v304, %v318
    %vm329 = vcmp.eq.s32.totalorder %v305, %v318
    %vm330 = vcmp.eq.s32.totalorder %v306, %v318
    %vm331 = vcmp.eq.s32.totalorder %v304, %v321
    %vm332 = vcmp.eq.s32.totalorder %v305, %v321
    %vm333 = vcmp.eq.s32.totalorder %v306, %v321
    %vm334 = vcmp.eq.s32.totalorder %v304, %v324
    %vm335 = vcmp.eq.s32.totalorder %v305, %v324
    %vm336 = vcmp.eq.s32.totalorder %v306, %v324
    %v337 = vsel %vm325, 0.0, %v184
    %v338 = vsel %vm326, 0.0, %v186
    %v339 = vsel %vm327, 0.0, %v237
    %v340 = vsel %vm328, 0.0, %v188
    %v341 = vsel %vm329, 0.0, %v190
    %v342 = vsel %vm330, 0.0, %v240
    %v343 = vsel %vm331, 0.0, %v194
    %v344 = vsel %vm332, 0.0, %v196
    %v345 = vsel %vm333, 0.0, %v245
    %v346 = vsel %vm334, 0.0, %v198
    %v347 = vsel %vm335, 0.0, %v200
    %v348 = vsel %vm336, 0.0, %v248
    %s349 = ssub.s32 300, %s307
    %v350 = vstv %s349
    %vm351 = vcmp.lt.s32.totalorder %v304, %v350
    %vm352 = vcmp.lt.s32.totalorder %v305, %v350
    %vm353 = vcmp.lt.s32.totalorder %v306, %v350
    %v354 = vsel %vm351, %v337, -inf
    %v355 = vsel %vm352, %v338, -inf
    %v356 = vsel %vm353, %v339, -inf
    %v357 = vsel %vm351, %v340, -inf
    %v358 = vsel %vm352, %v341, -inf
    %v359 = vsel %vm353, %v342, -inf
    %v360 = vsel %vm351, %v343, -inf
    %v361 = vsel %vm352, %v344, -inf
    %v362 = vsel %vm353, %v345, -inf
    %v363 = vsel %vm351, %v346, -inf
    %v364 = vsel %vm352, %v347, -inf
    %v365 = vsel %vm353, %v348, -inf
    %v366 = vmax.f32 %v354, %v355
    %v367 = vmax.f32 %v366, %v356
    %368 = vmax.xlane.f32.xlu0 %v367
    %v369 = vpop.xlane.xlu0 %368
    %v370 = vmax.f32 %v357, %v358
    %v371 = vmax.f32 %v370, %v359
    %372 = vmax.xlane.f32.xlu0 %v371
    %v373 = vpop.xlane.xlu0 %372
    %v374 = vmax.f32 %v360, %v361
    %v375 = vmax.f32 %v374, %v362
    %376 = vmax.xlane.f32.xlu0 %v375
    %v377 = vpop.xlane.xlu0 %376
    %v378 = vmax.f32 %v363, %v364
    %v379 = vmax.f32 %v378, %v365
    %380 = vmax.xlane.f32.xlu0 %v379
    %v381 = vpop.xlane.xlu0 %380
    %v382 = vld [vmem:[#allocation2] sm:$0xff]
    %v383 = vld [vmem:[#allocation2 + $0x8] sm:$0xff]
    %v384 = vld [vmem:[#allocation2 + $0x10] sm:$0xff]
    %v385 = vld [vmem:[#allocation2 + $0x18] sm:$0xff]
    %v386 = vmax.f32 %v382, %v369
    %v387 = vmax.f32 %v383, %v373
    %v388 = vmax.f32 %v384, %v377
    %v389 = vmax.f32 %v385, %v381
    %v390 = vsub.f32 %v382, %v386
    %v391 = vsub.f32 %v383, %v387
    %v392 = vsub.f32 %v384, %v388
    %v393 = vsub.f32 %v385, %v389
    %v394 = vmul.f32 %v390, 1.442695
    %v395 = vpow.pop %v394
    %v396 = vmul.f32 %v391, 1.442695
    %v397 = vpow.pop %v396
    %v398 = vmul.f32 %v392, 1.442695
    %v399 = vpow.pop %v398
    %v400 = vmul.f32 %v393, 1.442695
    %v401 = vpow.pop %v400
    %403 = vset.pattern.permute.xlu0 0
    %404 = vperm.xlu0 %403, %v386
    %v405 = vpop.permute.xlu0 %404
    %408 = vset.pattern.permute.xlu0 0
    %409 = vperm.xlu0 %408, %v387
    %v410 = vpop.permute.xlu0 %409
    %413 = vset.pattern.permute.xlu0 0
    %414 = vperm.xlu0 %413, %v388
    %v415 = vpop.permute.xlu0 %414
    %418 = vset.pattern.permute.xlu0 0
    %419 = vperm.xlu0 %418, %v389
    %v420 = vpop.permute.xlu0 %419
    %v422 = vsub.f32 %v354, %v405
    %v423 = vsub.f32 %v355, %v405
    %v424 = vsub.f32 %v356, %v405
    %v425 = vsub.f32 %v357, %v410
    %v426 = vsub.f32 %v358, %v410
    %v427 = vsub.f32 %v359, %v410
    %v428 = vsub.f32 %v360, %v415
    %v429 = vsub.f32 %v361, %v415
    %v430 = vsub.f32 %v362, %v415
    %v431 = vsub.f32 %v363, %v420
    %v432 = vsub.f32 %v364, %v420
    %v433 = vsub.f32 %v365, %v420
    %v434 = vmul.f32 %v422, 1.442695
    %v435 = vpow.pop %v434
    %v436 = vmul.f32 %v423, 1.442695
    %v437 = vpow.pop %v436
    %v438 = vmul.f32 %v424, 1.442695
    %v439 = vpow.pop %v438
    %v440 = vmul.f32 %v425, 1.442695
    %v441 = vpow.pop %v440
    %v442 = vmul.f32 %v426, 1.442695
    %v443 = vpow.pop %v442
    %v444 = vmul.f32 %v427, 1.442695
    %v445 = vpow.pop %v444
    %v446 = vmul.f32 %v428, 1.442695
    %v447 = vpow.pop %v446
    %v448 = vmul.f32 %v429, 1.442695
    %v449 = vpow.pop %v448
    %v450 = vmul.f32 %v430, 1.442695
    %v451 = vpow.pop %v450
    %v452 = vmul.f32 %v431, 1.442695
    %v453 = vpow.pop %v452
    %v454 = vmul.f32 %v432, 1.442695
    %v455 = vpow.pop %v454
    %v456 = vmul.f32 %v433, 1.442695
    %v457 = vpow.pop %v456
    %v458 = vld [vmem:[#allocation3] sm:$0xff]
    %v459 = vld [vmem:[#allocation3 + $0x8] sm:$0xff]
    %v460 = vld [vmem:[#allocation3 + $0x10] sm:$0xff]
    %v461 = vld [vmem:[#allocation3 + $0x18] sm:$0xff]
    %v462 = vmul.f32 %v395, %v458
    %v463 = vmul.f32 %v397, %v459
    %v464 = vmul.f32 %v399, %v460
    %v465 = vmul.f32 %v401, %v461
    %v466 = vadd.f32 %v435, %v437
    %v467 = vadd.f32 %v466, %v439
    %468 = vadd.xlane.f32.xlu0 %v467
    %v469 = vpop.xlane.xlu0 %468
    %v470 = vadd.f32 %v441, %v443
    %v471 = vadd.f32 %v470, %v445
    %472 = vadd.xlane.f32.xlu0 %v471
    %v473 = vpop.xlane.xlu0 %472
    %v474 = vadd.f32 %v447, %v449
    %v475 = vadd.f32 %v474, %v451
    %476 = vadd.xlane.f32.xlu0 %v475
    %v477 = vpop.xlane.xlu0 %476
    %v478 = vadd.f32 %v453, %v455
    %v479 = vadd.f32 %v478, %v457
    %480 = vadd.xlane.f32.xlu0 %v479
    %v481 = vpop.xlane.xlu0 %480
    %v482 = vadd.f32 %v462, %v469
    %v483 = vadd.f32 %v463, %v473
    %v484 = vadd.f32 %v464, %v477
    %v485 = vadd.f32 %v465, %v481
    %vm486 = vcmask 7168
    %487 = vst.msk [vmem:[#allocation3] sm:$0xff] %vm486, %v482
    %488 = vst.msk [vmem:[#allocation3 + $0x8] sm:$0xff] %vm486, %v483
    %489 = vst.msk [vmem:[#allocation3 + $0x10] sm:$0xff] %vm486, %v484
    %490 = vst.msk [vmem:[#allocation3 + $0x18] sm:$0xff] %vm486, %v485
    %491 = vst.msk [vmem:[#allocation2] sm:$0xff] %vm486, %v386
    %492 = vst.msk [vmem:[#allocation2 + $0x8] sm:$0xff] %vm486, %v387
    %493 = vst.msk [vmem:[#allocation2 + $0x10] sm:$0xff] %vm486, %v388
    %494 = vst.msk [vmem:[#allocation2 + $0x18] sm:$0xff] %vm486, %v389
    // Predicated region
    $region22: #{tpu_custom_call.1} parent=1 // pred_check
      %p495 = pneg %p32
    $region23: #{tpu_custom_call.1} parent=1 // pred_check_branch
      %497 = sbr.rel (%p495) target = $region25
    $region24: #{tpu_custom_call.1} parent=1 // pred_region
      %v498 = vld [vmem:[#allocation2] sm:$0xff]
      %v499 = vld [vmem:[#allocation2 + $0x8] sm:$0xff]
      %v500 = vld [vmem:[#allocation2 + $0x10] sm:$0xff]
      %v501 = vld [vmem:[#allocation2 + $0x18] sm:$0xff]
      %v502 = vld [vmem:[#allocation3] sm:$0xff]
      %v503 = vld [vmem:[#allocation3 + $0x8] sm:$0xff]
      %v504 = vld [vmem:[#allocation3 + $0x10] sm:$0xff]
      %v505 = vld [vmem:[#allocation3 + $0x18] sm:$0xff]
      %v506 = vlog2.pop %v502
      %v507 = vmul.f32 %v506, 0.6931472
      %v508 = vlog2.pop %v503
      %v509 = vmul.f32 %v508, 0.6931472
      %v510 = vlog2.pop %v504
      %v511 = vmul.f32 %v510, 0.6931472
      %v512 = vlog2.pop %v505
      %v513 = vmul.f32 %v512, 0.6931472
      %v514 = vadd.f32 %v498, %v507
      %v515 = vadd.f32 %v499, %v509
      %v516 = vadd.f32 %v500, %v511
      %v517 = vadd.f32 %v501, %v513
      %518 = vst.msk [vmem:[%s4] sm:$0xff] %vm486, %v514
      %519 = vst.msk [vmem:[%s4 + $0x8] sm:$0xff] %vm486, %v515
      %520 = vst.msk [vmem:[%s4 + $0x10] sm:$0xff] %vm486, %v516
      %521 = vst.msk [vmem:[%s4 + $0x18] sm:$0xff] %vm486, %v517
    $region25: #{tpu_custom_call.1} parent=1 // pred_fallthru
      _
    // Predicated region
    $region26: #{tpu_custom_call.1} parent=1 // pred_check
      _
    $region27: #{tpu_custom_call.1} parent=1 // pred_check_branch
      %523 = sbr.rel (0) target = $region29
    $region28: #{tpu_custom_call.1} parent=1 // pred_region
      %s525 = ssub.s32 768, 768
      %526 = vsyncadd [#allocation6], %s525
      %s527 = sshll.u32 [#allocation7], 4
      %s528 = int_to_ptr.vmem [resolvable:$true] %s527
      %533 = dma.vmem_to_hbm [thread:$0]  %s528, 768, %s3, [#allocation6], 192, 192, 12
    $region29: #{tpu_custom_call.1} parent=1 // pred_fallthru
      _
    // Predicated region
    $region30: #{tpu_custom_call.1} parent=1 // pred_check
      _
    $region31: #{tpu_custom_call.1} parent=1 // pred_check_branch
      %535 = sbr.rel (0) target = $region33
    $region32: #{tpu_custom_call.1} parent=1 // pred_region
      _
    $region33: #{tpu_custom_call.1} parent=1 // pred_fallthru
      _
    // Predicated region
    $region34: #{tpu_custom_call.1} parent=1 // pred_check
      _
    $region35: #{tpu_custom_call.1} parent=1 // pred_check_branch
      %537 = sbr.rel (0) target = $region37
    $region36: #{tpu_custom_call.1} parent=1 // pred_region
      %538 = dma.done [#allocation6], 768
    $region37: #{tpu_custom_call.1} parent=1 // pred_fallthru
      _
    // Predicated region
    $region38: #{tpu_custom_call.1} parent=1 // pred_check
      _
    $region39: #{tpu_custom_call.1} parent=1 // pred_check_branch
      %540 = sbr.rel (0) target = $region41
    $region40: #{tpu_custom_call.1} parent=1 // pred_region
      _
    $region41: #{tpu_custom_call.1} parent=1 // pred_fallthru
      _
    %541 = vsyncpa [#allocation5], 1
    %542 = vsyncpa [#allocation6], 1

</llo_original>
